<compile_context>
chip_gen: v7x
topology: tpu7x:2x2x1
jax: 0.10.0
libtpu: 0.0.40
codegen_flags: <defaults>
</compile_context>

<pallas_src>
import functools

import jax
import jax.numpy as jnp
from jax import lax
from jax.experimental import pallas as pl
from jax.experimental.pallas import tpu as pltpu


def _kd_tile_loss(x, t, *, c_t):
    """Per-pixel (un-negated, un-reduced) KD loss for one spatial tile.

    x: (C_in, TILE) f32 student logits
    t: (C_t, TILE)  f32 teacher logits (already scaled by alpha)
    returns (1, TILE) f32
    """
    # den = logsumexp over all student channels.
    x_max = jnp.max(x, axis=0, keepdims=True)
    den = x_max + jnp.log(jnp.sum(jnp.exp(x - x_max), axis=0, keepdims=True))

    # logsumexp over background channels {0} U {c_t .. C_in-1}: two contiguous
    # sublane slices with their own max (no full-width iota mask, no overflow
    # from exp'ing non-background rows, fewer EUP exps).
    x0 = x[0:1, :]                                   # (1, TILE)
    xn = x[c_t:, :]                                  # (new_cl, TILE)
    bkg_max = jnp.maximum(x0, jnp.max(xn, axis=0, keepdims=True))
    sum_exb = (jnp.exp(x0 - bkg_max)
               + jnp.sum(jnp.exp(xn - bkg_max), axis=0, keepdims=True))
    lse_bkg = bkg_max + jnp.log(sum_exb)

    # Teacher softmax folded algebraically (labels sum to 1):
    #   loss * c_t = labels0*lse_bkg + sum_{c>=1} labels_c*x_c - den
    # with labels = et / sum_et.  et0 taken directly from row 0 (exact), and
    # the c>=1 dot written as (full dot - row-0 term) so no unaligned slices
    # and no iota masks are needed:
    #   num = et0*(lse_bkg - x0) + sum_{c=0..c_t-1} et_c*x_c
    t_max = jnp.max(t, axis=0, keepdims=True)
    et = jnp.exp(t - t_max)                          # (C_t, TILE)
    sum_et = jnp.sum(et, axis=0, keepdims=True)
    et0 = et[0:1, :]
    dot_full = jnp.sum(et * x[:c_t, :], axis=0, keepdims=True)
    num = et0 * (lse_bkg - x0) + dot_full
    return (num / sum_et - den) * jnp.float32(1.0 / c_t)


def _kd_kernel(*refs, c_t, alpha, has_mask, reduce_sum, tile, valid_len, nt_inner):
    idx = 0
    x_ref = refs[idx]; idx += 1
    t_ref = refs[idx]; idx += 1
    if has_mask:
        m_ref = refs[idx]; idx += 1
    else:
        m_ref = None
    o_ref = refs[idx]; idx += 1
    acc_ref = refs[idx] if reduce_sum else None

    x = x_ref[...].astype(jnp.float32)
    t = t_ref[...].astype(jnp.float32)
    if alpha != 1.0:
        t = t * jnp.float32(alpha)

    loss = _kd_tile_loss(x, t, c_t=c_t)              # (1, TILE)

    if has_mask:
        # raw mask streamed + compared in-kernel; select (not multiply) so
        # garbage in boundary lanes never poisons valid lanes.
        loss = jnp.where(m_ref[...] == 0, loss, jnp.float32(0.0))

    if reduce_sum:
        s = pl.program_id(2)
        if valid_len is not None:
            # zero lanes past the true spatial extent: ragged boundary blocks
            # and fully-redundant grid steps (whose index_map was clamped).
            tile_idx = pl.program_id(1) * nt_inner + s
            pos = tile_idx * tile + lax.broadcasted_iota(jnp.int32, (1, tile), 1)
            loss = jnp.where(pos < valid_len, loss, jnp.float32(0.0))

        @pl.when(s == 0)
        def _():
            acc_ref[...] = jnp.zeros_like(acc_ref)
        acc_ref[...] += loss                         # pure vector add per step

        @pl.when(s == pl.num_programs(2) - 1)
        def _():
            # single cross-lane reduce + single (1,1) store per (batch, chunk)
            o_ref[...] = jnp.sum(acc_ref[...], axis=1, keepdims=True)
    else:
        if valid_len is not None:
            pos = (pl.program_id(1) * tile
                   + lax.broadcasted_iota(jnp.int32, (1, tile), 1))
            loss = jnp.where(pos < valid_len, loss, jnp.float32(0.0))
        o_ref[...] = loss


def _vmem_budget():
    """Generation-aware VMEM budget / scoped limit (bytes)."""
    try:
        cap = int(pltpu.get_tpu_info().vmem_capacity_bytes)
    except Exception:
        cap = 64 << 20                               # conservative (v7x-sized)
    budget = min(cap // 2, 64 << 20)                 # 32 MiB on v7x, 64 MiB on v5e/v6e
    limit = int(min(cap * 3 // 4, budget + (16 << 20)))
    return budget, limit


def _choose_tile(l, per_lane_bytes, budget_bytes, cap=8192):
    """Largest 128-multiple lane tile within the VMEM budget.

    No divisibility requirement: ragged tails are handled by the cdiv grid +
    in-kernel lane masking, so awkward L no longer collapses the tile size.
    """
    if l < 128:
        return l                                     # tiny input: full extent
    max_by_vmem = max(128, budget_bytes // max(per_lane_bytes, 1))
    t = (min(cap, max_by_vmem) // 128) * 128
    t = max(128, t)
    return min(t, (l // 128) * 128)                  # never exceed the array


def mask_kd_loss(inputs, targets, mask=None, reduction="mean", alpha=1.0):
    """Pallas implementation of MaskKnowledgeDistillationLoss.forward.

    inputs:  (B, C_in, H, W) student logits (f32 or bf16; bf16 recommended on
             v5e -- the kernel upcasts in-kernel, all math stays f32)
    targets: (B, C_t,  H, W) teacher logits, C_t < C_in
    mask:    optional (B, H, W) int/bool; pixels with mask != 0 are dropped
    """
    B, C_in, H, W = inputs.shape
    C_t = targets.shape[1]
    assert C_in > C_t, "inputs must have more channels (new classes) than targets"
    L = H * W

    x = inputs.reshape(B, C_in, L)
    t = targets.reshape(B, C_t, L)
    has_mask = mask is not None
    m = mask.reshape(B, 1, L) if has_mask else None

    budget, vmem_limit = _vmem_budget()
    # DMA'd blocks double-buffered (x2); f32 working set charged once with a
    # ~3x live-intermediate multiplier plus a handful of (1, TILE) rows.
    dma_bytes = (C_in * x.dtype.itemsize + C_t * t.dtype.itemsize
                 + (m.dtype.itemsize if has_mask else 0))
    work_bytes = 4 * (3 * (C_in + C_t) + 16)
    TILE = _choose_tile(L, 2 * dma_bytes + work_bytes, budget)
    NT = (L + TILE - 1) // TILE

    reduce_sum = reduction in ("mean", "sum")

    if reduce_sum:
        # Extra 'parallel' spatial-chunk axis so both v7x TensorCores are fed
        # even when B == 1; partial sums per (batch, chunk) summed in wrapper.
        NCHUNK = 2 if NT >= 2 else 1
        NT_inner = (NT + NCHUNK - 1) // NCHUNK
        need_valid = (NCHUNK * NT_inner * TILE != L)
        valid_len = L if need_valid else None

        kernel = functools.partial(
            _kd_kernel, c_t=C_t, alpha=float(alpha), has_mask=has_mask,
            reduce_sum=True, tile=TILE, valid_len=valid_len, nt_inner=NT_inner)

        def in_idx(b, c, s):
            # clamp so over-run grid steps never index past the array; their
            # lanes are zeroed by the pos < valid_len select in-kernel.
            return (b, 0, jnp.minimum(c * NT_inner + s, NT - 1))

        in_specs = [pl.BlockSpec((pl.Squeezed(), C_in, TILE), in_idx),
                    pl.BlockSpec((pl.Squeezed(), C_t, TILE), in_idx)]
        args = [x, t]
        if has_mask:
            in_specs.append(pl.BlockSpec((pl.Squeezed(), 1, TILE), in_idx))
            args.append(m)

        out = pl.pallas_call(
            kernel,
            out_shape=jax.ShapeDtypeStruct((B, NCHUNK, 1, 1), jnp.float32),
            grid=(B, NCHUNK, NT_inner),
            in_specs=in_specs,
            out_specs=pl.BlockSpec((pl.Squeezed(), pl.Squeezed(), 1, 1),
                                   lambda b, c, s: (b, c, 0, 0)),
            scratch_shapes=[pltpu.VMEM((1, TILE), jnp.float32)],
            compiler_params=pltpu.CompilerParams(
                dimension_semantics=("parallel", "parallel", "arbitrary"),
                vmem_limit_bytes=vmem_limit),
        )(*args)

        total = jnp.sum(out)
        if reduction == "mean":
            return -total / (B * H * W)
        return -total

    # reduction == 'none': per-pixel path, lane-dense output slab.
    need_valid = (NT * TILE != L)
    valid_len = L if need_valid else None
    kernel = functools.partial(
        _kd_kernel, c_t=C_t, alpha=float(alpha), has_mask=has_mask,
        reduce_sum=False, tile=TILE, valid_len=valid_len, nt_inner=1)

    in_specs = [pl.BlockSpec((pl.Squeezed(), C_in, TILE), lambda b, s: (b, 0, s)),
                pl.BlockSpec((pl.Squeezed(), C_t, TILE), lambda b, s: (b, 0, s))]
    args = [x, t]
    if has_mask:
        in_specs.append(pl.BlockSpec((pl.Squeezed(), 1, TILE), lambda b, s: (b, 0, s)))
        args.append(m)

    out = pl.pallas_call(
        kernel,
        out_shape=jax.ShapeDtypeStruct((B, 1, NT * TILE), jnp.float32),
        grid=(B, NT),
        in_specs=in_specs,
        out_specs=pl.BlockSpec((pl.Squeezed(), 1, TILE), lambda b, s: (b, 0, s)),
        compiler_params=pltpu.CompilerParams(
            dimension_semantics=("parallel", "parallel"),
            vmem_limit_bytes=vmem_limit),
    )(*args)
    return -out[:, 0, :L].reshape(B, H, W)


def ref_mask_kd_loss(inputs, targets, mask=None, reduction="mean", alpha=1.0):
    """Pure-JAX reference mirroring the PyTorch forward exactly."""
    new_cl = inputs.shape[1] - targets.shape[1]
    targets = targets * alpha
    bkg_idx = jnp.array([0] + list(range(targets.shape[1], inputs.shape[1])))
    den = jax.scipy.special.logsumexp(inputs, axis=1)
    outputs_no_bgk = inputs[:, 1:-new_cl] - den[:, None]
    outputs_bkg = jax.scipy.special.logsumexp(inputs[:, bkg_idx], axis=1) - den
    labels = jax.nn.softmax(targets, axis=1)
    loss = (labels[:, 0] * outputs_bkg
            + (labels[:, 1:] * outputs_no_bgk).sum(axis=1)) / targets.shape[1]
    if mask is not None:
        loss = loss * (mask == 0).astype(jnp.float32)
    if reduction == "mean":
        return -jnp.mean(loss)
    elif reduction == "sum":
        return -jnp.sum(loss)
    else:
        return -loss


if __name__ == "__main__":
    key = jax.random.PRNGKey(0)
    k1, k2, k3 = jax.random.split(key, 3)

    B, C_t, new_cl, H, W = 2, 4, 3, 16, 16
    C_in = C_t + new_cl

    inputs = jax.random.normal(k1, (B, C_in, H, W), dtype=jnp.float32) * 2.0
    targets = jax.random.normal(k2, (B, C_t, H, W), dtype=jnp.float32) * 2.0
    mask = jax.random.bernoulli(k3, 0.3, (B, H, W)).astype(jnp.int32)

    def check(out, ref, name, atol=1e-4, rtol=1e-4):
        out = jax.block_until_ready(out)
        assert jnp.allclose(out, ref, atol=atol, rtol=rtol), (name, out, ref)

    # masked, mean (in-kernel scratch accumulation path)
    check(mask_kd_loss(inputs, targets, mask=mask),
          ref_mask_kd_loss(inputs, targets, mask=mask), "mask_mean")

    # no mask (variant with no mask DMA at all), sum
    check(mask_kd_loss(inputs, targets, reduction="sum"),
          ref_mask_kd_loss(inputs, targets, reduction="sum"), "nomask_sum")

    # per-pixel path, reduction='none'
    check(mask_kd_loss(inputs, targets, mask=mask, reduction="none"),
          ref_mask_kd_loss(inputs, targets, mask=mask, reduction="none"),
          "mask_none")

    # bf16 logits streamed from HBM, upcast in-kernel (v5e calling convention)
    ib, tb = inputs.astype(jnp.bfloat16), targets.astype(jnp.bfloat16)
    check(mask_kd_loss(ib, tb, mask=mask),
          ref_mask_kd_loss(ib.astype(jnp.float32), tb.astype(jnp.float32), mask=mask),
          "bf16_mask_mean", atol=1e-3, rtol=1e-3)

    # L % 128 != 0 -> ragged boundary blocks + in-kernel lane mask (no wrapper pad)
    Hp, Wp = 12, 12
    ip = jax.random.normal(k1, (B, C_in, Hp, Wp), dtype=jnp.float32)
    tp = jax.random.normal(k2, (B, C_t, Hp, Wp), dtype=jnp.float32)
    mp = jax.random.bernoulli(k3, 0.3, (B, Hp, Wp)).astype(jnp.int32)
    check(mask_kd_loss(ip, tp), ref_mask_kd_loss(ip, tp), "ragged_nomask_mean")
    check(mask_kd_loss(ip, tp, mask=mp, reduction="none"),
          ref_mask_kd_loss(ip, tp, mask=mp, reduction="none"), "ragged_mask_none")

    # B=1, larger spatial extent -> exercises the parallel chunk axis, clamped
    # index_map for the redundant grid step, and the partial tail block.
    Hl, Wl = 125, 160
    il = jax.random.normal(k1, (1, C_in, Hl, Wl), dtype=jnp.float32)
    tl = jax.random.normal(k2, (1, C_t, Hl, Wl), dtype=jnp.float32)
    ml = jax.random.bernoulli(k3, 0.3, (1, Hl, Wl)).astype(jnp.int32)
    check(mask_kd_loss(il, tl, mask=ml),
          ref_mask_kd_loss(il, tl, mask=ml), "chunked_mask_mean")

    print("KERNEL_OK")
</pallas_src>

<mosaic_0001>
module attributes {stable_mosaic.version = 11 : i64} {
  func.func @_kd_kernel(%arg0: i32, %arg1: i32, %arg2: i32, %arg3: memref<1x7x256xf32, #tpu.memory_space<vmem>>, %arg4: memref<1x4x256xf32, #tpu.memory_space<vmem>>, %arg5: memref<1x1x256xi32, #tpu.memory_space<vmem>>, %arg6: memref<1x1x1x1xf32, #tpu.memory_space<vmem>>, %arg7: memref<1x256xf32, #tpu.memory_space<vmem>>) attributes {dimension_semantics = [#tpu.dimension_semantics<parallel>, #tpu.dimension_semantics<parallel>, #tpu.dimension_semantics<arbitrary>], iteration_bounds = array<i64: 2, 1, 1>, scalar_prefetch = 0 : i64, scratch_operands = 1 : i64, tpu.core_type = #tpu.core_type<tc>, window_params = [{transform_indices = @transform_0, window_bounds = array<i64: 1, 7, 256>}, {transform_indices = @transform_1, window_bounds = array<i64: 1, 4, 256>}, {transform_indices = @transform_2, window_bounds = array<i64: 1, 1, 256>}, {transform_indices = @transform_3, window_bounds = array<i64: 1, 1, 1, 1>}]} {
    %c0 = arith.constant 0 : index
    %c0_0 = arith.constant 0 : index
    %c0_1 = arith.constant 0 : index
    %0 = vector.load %arg3[%c0, %c0_0, %c0_1] : memref<1x7x256xf32, #tpu.memory_space<vmem>>, vector<1x7x256xf32>
    %1 = vector.shape_cast %0 : vector<1x7x256xf32> to vector<7x256xf32>
    %c0_2 = arith.constant 0 : index
    %c0_3 = arith.constant 0 : index
    %c0_4 = arith.constant 0 : index
    %2 = vector.load %arg4[%c0_2, %c0_3, %c0_4] : memref<1x4x256xf32, #tpu.memory_space<vmem>>, vector<1x4x256xf32>
    %3 = vector.shape_cast %2 : vector<1x4x256xf32> to vector<4x256xf32>
    %cst = arith.constant dense<0xFF800000> : vector<256xf32>
    %4 = vector.multi_reduction <maximumf>, %1, %cst [0] : vector<7x256xf32> to vector<256xf32>
    %5 = vector.shape_cast %4 : vector<256xf32> to vector<1x256xf32>
    %6 = vector.broadcast %5 : vector<1x256xf32> to vector<7x256xf32>
    %7 = arith.subf %1, %6 : vector<7x256xf32>
    %8 = math.exp %7 : vector<7x256xf32>
    %cst_5 = arith.constant dense<0.000000e+00> : vector<256xf32>
    %9 = vector.multi_reduction <add>, %8, %cst_5 [0] : vector<7x256xf32> to vector<256xf32>
    %10 = vector.shape_cast %9 : vector<256xf32> to vector<1x256xf32>
    %11 = math.log %10 : vector<1x256xf32>
    %12 = arith.addf %5, %11 : vector<1x256xf32>
    %13 = vector.extract_strided_slice %1 {offsets = [0, 0], sizes = [1, 256], strides = [1, 1]} : vector<7x256xf32> to vector<1x256xf32>
    %14 = vector.extract_strided_slice %1 {offsets = [4, 0], sizes = [3, 256], strides = [1, 1]} : vector<7x256xf32> to vector<3x256xf32>
    %cst_6 = arith.constant dense<0xFF800000> : vector<256xf32>
    %15 = vector.multi_reduction <maximumf>, %14, %cst_6 [0] : vector<3x256xf32> to vector<256xf32>
    %16 = vector.shape_cast %15 : vector<256xf32> to vector<1x256xf32>
    %17 = arith.maximumf %13, %16 : vector<1x256xf32>
    %18 = arith.subf %13, %17 : vector<1x256xf32>
    %19 = math.exp %18 : vector<1x256xf32>
    %20 = vector.broadcast %17 : vector<1x256xf32> to vector<3x256xf32>
    %21 = arith.subf %14, %20 : vector<3x256xf32>
    %22 = math.exp %21 : vector<3x256xf32>
    %cst_7 = arith.constant dense<0.000000e+00> : vector<256xf32>
    %23 = vector.multi_reduction <add>, %22, %cst_7 [0] : vector<3x256xf32> to vector<256xf32>
    %24 = vector.shape_cast %23 : vector<256xf32> to vector<1x256xf32>
    %25 = arith.addf %19, %24 : vector<1x256xf32>
    %26 = math.log %25 : vector<1x256xf32>
    %27 = arith.addf %17, %26 : vector<1x256xf32>
    %cst_8 = arith.constant dense<0xFF800000> : vector<256xf32>
    %28 = vector.multi_reduction <maximumf>, %3, %cst_8 [0] : vector<4x256xf32> to vector<256xf32>
    %29 = vector.shape_cast %28 : vector<256xf32> to vector<1x256xf32>
    %30 = vector.broadcast %29 : vector<1x256xf32> to vector<4x256xf32>
    %31 = arith.subf %3, %30 : vector<4x256xf32>
    %32 = math.exp %31 : vector<4x256xf32>
    %cst_9 = arith.constant dense<0.000000e+00> : vector<256xf32>
    %33 = vector.multi_reduction <add>, %32, %cst_9 [0] : vector<4x256xf32> to vector<256xf32>
    %34 = vector.shape_cast %33 : vector<256xf32> to vector<1x256xf32>
    %35 = vector.extract_strided_slice %32 {offsets = [0, 0], sizes = [1, 256], strides = [1, 1]} : vector<4x256xf32> to vector<1x256xf32>
    %36 = vector.extract_strided_slice %1 {offsets = [0, 0], sizes = [4, 256], strides = [1, 1]} : vector<7x256xf32> to vector<4x256xf32>
    %37 = arith.mulf %32, %36 : vector<4x256xf32>
    %cst_10 = arith.constant dense<0.000000e+00> : vector<256xf32>
    %38 = vector.multi_reduction <add>, %37, %cst_10 [0] : vector<4x256xf32> to vector<256xf32>
    %39 = vector.shape_cast %38 : vector<256xf32> to vector<1x256xf32>
    %40 = arith.subf %27, %13 : vector<1x256xf32>
    %41 = arith.mulf %35, %40 : vector<1x256xf32>
    %42 = arith.addf %41, %39 : vector<1x256xf32>
    %43 = arith.divf %42, %34 : vector<1x256xf32>
    %44 = arith.subf %43, %12 : vector<1x256xf32>
    %cst_11 = arith.constant 2.500000e-01 : f32
    %45 = vector.broadcast %cst_11 : f32 to vector<1x256xf32>
    %46 = arith.mulf %44, %45 : vector<1x256xf32>
    %c0_12 = arith.constant 0 : index
    %c0_13 = arith.constant 0 : index
    %c0_14 = arith.constant 0 : index
    %47 = vector.load %arg5[%c0_12, %c0_13, %c0_14] : memref<1x1x256xi32, #tpu.memory_space<vmem>>, vector<1x1x256xi32>
    %48 = vector.shape_cast %47 : vector<1x1x256xi32> to vector<1x256xi32>
    %c0_i32 = arith.constant 0 : i32
    %49 = vector.broadcast %c0_i32 : i32 to vector<1x256xi32>
    %50 = arith.cmpi eq, %48, %49 : vector<1x256xi32>
    %cst_15 = arith.constant 0.000000e+00 : f32
    %51 = vector.broadcast %cst_15 : f32 to vector<1x256xf32>
    %52 = arith.select %50, %46, %51 : vector<1x256xi1>, vector<1x256xf32>
    %c0_i32_16 = arith.constant 0 : i32
    %53 = arith.cmpi eq, %arg2, %c0_i32_16 : i32
    %54 = arith.extui %53 : i1 to i32
    %c0_i32_17 = arith.constant 0 : i32
    %55 = arith.cmpi ne, %54, %c0_i32_17 : i32
    scf.if %55 {
      %cst_24 = arith.constant 0.000000e+00 : f32
      %62 = vector.broadcast %cst_24 : f32 to vector<1x256xf32>
      %c0_25 = arith.constant 0 : index
      %c0_26 = arith.constant 0 : index
      %63 = vector.load %arg7[%c0_25, %c0_26] : memref<1x256xf32, #tpu.memory_space<vmem>>, vector<1x256xf32>
      tpu.vector_store %arg7[%c0_25, %c0_26], %62 {strides = array<i32>} : memref<1x256xf32, #tpu.memory_space<vmem>>, vector<1x256xf32>,
    } else {
    }
    %c0_18 = arith.constant 0 : index
    %c0_19 = arith.constant 0 : index
    %56 = vector.load %arg7[%c0_18, %c0_19] : memref<1x256xf32, #tpu.memory_space<vmem>>, vector<1x256xf32>
    %57 = arith.addf %56, %52 : vector<1x256xf32>
    %c0_20 = arith.constant 0 : index
    %c0_21 = arith.constant 0 : index
    %58 = vector.load %arg7[%c0_20, %c0_21] : memref<1x256xf32, #tpu.memory_space<vmem>>, vector<1x256xf32>
    tpu.vector_store %arg7[%c0_20, %c0_21], %57 {strides = array<i32>} : memref<1x256xf32, #tpu.memory_space<vmem>>, vector<1x256xf32>,
    %c0_i32_22 = arith.constant 0 : i32
    %59 = arith.cmpi eq, %arg2, %c0_i32_22 : i32
    %60 = arith.extui %59 : i1 to i32
    %c0_i32_23 = arith.constant 0 : i32
    %61 = arith.cmpi ne, %60, %c0_i32_23 : i32
    scf.if %61 {
      %c0_24 = arith.constant 0 : index
      %c0_25 = arith.constant 0 : index
      %62 = vector.load %arg7[%c0_24, %c0_25] : memref<1x256xf32, #tpu.memory_space<vmem>>, vector<1x256xf32>
      %cst_26 = arith.constant dense<0.000000e+00> : vector<1xf32>
      %63 = vector.multi_reduction <add>, %62, %cst_26 [1] : vector<1x256xf32> to vector<1xf32>
      %64 = vector.shape_cast %63 : vector<1xf32> to vector<1x1xf32>
      %c0_27 = arith.constant 0 : index
      %c0_28 = arith.constant 0 : index
      %c0_29 = arith.constant 0 : index
      %c0_30 = arith.constant 0 : index
      %65 = vector.load %arg6[%c0_27, %c0_28, %c0_29, %c0_30] : memref<1x1x1x1xf32, #tpu.memory_space<vmem>>, vector<1x1x1x1xf32>
      %66 = vector.shape_cast %65 : vector<1x1x1x1xf32> to vector<1x1xf32>
      %67 = vector.shape_cast %64 : vector<1x1xf32> to vector<1x1x1x1xf32>
      tpu.vector_store %arg6[%c0_27, %c0_28, %c0_29, %c0_30], %67 {strides = array<i32>} : memref<1x1x1x1xf32, #tpu.memory_space<vmem>>, vector<1x1x1x1xf32>,
    } else {
    }
    return
  }
  func.func @transform_0(%arg0: i32, %arg1: i32, %arg2: i32) -> (i32, i32, i32) {
    %c1_i32 = arith.constant 1 : i32
    %0 = arith.muli %arg1, %c1_i32 : i32
    %1 = arith.addi %0, %arg2 : i32
    %c0_i32 = arith.constant 0 : i32
    %2 = arith.minsi %1, %c0_i32 : i32
    %c0_i32_0 = arith.constant 0 : i32
    %c0_i32_1 = arith.constant 0 : i32
    return %arg0, %c0_i32_0, %2 : i32, i32, i32
  }
  func.func @transform_1(%arg0: i32, %arg1: i32, %arg2: i32) -> (i32, i32, i32) {
    %c1_i32 = arith.constant 1 : i32
    %0 = arith.muli %arg1, %c1_i32 : i32
    %1 = arith.addi %0, %arg2 : i32
    %c0_i32 = arith.constant 0 : i32
    %2 = arith.minsi %1, %c0_i32 : i32
    %c0_i32_0 = arith.constant 0 : i32
    %c0_i32_1 = arith.constant 0 : i32
    return %arg0, %c0_i32_0, %2 : i32, i32, i32
  }
  func.func @transform_2(%arg0: i32, %arg1: i32, %arg2: i32) -> (i32, i32, i32) {
    %c1_i32 = arith.constant 1 : i32
    %0 = arith.muli %arg1, %c1_i32 : i32
    %1 = arith.addi %0, %arg2 : i32
    %c0_i32 = arith.constant 0 : i32
    %2 = arith.minsi %1, %c0_i32 : i32
    %c0_i32_0 = arith.constant 0 : i32
    %c0_i32_1 = arith.constant 0 : i32
    return %arg0, %c0_i32_0, %2 : i32, i32, i32
  }
  func.func @transform_3(%arg0: i32, %arg1: i32, %arg2: i32) -> (i32, i32, i32, i32) {
    %c0_i32 = arith.constant 0 : i32
    %c0_i32_0 = arith.constant 0 : i32
    %c0_i32_1 = arith.constant 0 : i32
    return %arg0, %arg1, %c0_i32, %c0_i32_0 : i32, i32, i32, i32
  }
}

</mosaic_0001>

<llo_original>
// kernel: tpu_custom_call.1
$region0: #{tpu_custom_call.1}
  #allocation0 [shape = 'u32[]', space=smem, size = 0x4, offset = 0x4, fixed_abs, tag = 'smem constant byte address 0x4 - core index']
  #allocation1 [shape = 'u32[144,128]{1,0:T(1,128)}', space=vmem, size = 0x12000, scoped, tag = 'internal scratch']
  #allocation2 [shape = 'f32[1,256]{1,0:T(1,128)}', space=vmem, size = 0x400, scoped, tag = 'scratch operand']
  %s0 = inlined_call_operand.vmem [shape: f32[2,7,256], index: 0, kind: input, shape index: {}]
  %s1 = inlined_call_operand.vmem [shape: f32[2,4,256], index: 1, kind: input, shape index: {}]
  %s2 = inlined_call_operand.vmem [shape: s32[2,1,256], index: 2, kind: input, shape index: {}]
  %s3 = inlined_call_operand.vmem [shape: f32[2,1,1,1], index: 3, kind: output, shape index: {}]
  %s4 = sld [smem:[#allocation0]]
  $region53: #{tpu_custom_call.1} parent=0
    _
  %s6 = ssub.s32 1, %s4
  %s7 = scalar_select 0, %s6, %s4
  loop: start=0, step=1, limit=4
  $region2: #{tpu_custom_call.1} parent=0 // loop_pre_header
    _
  $region3: #{tpu_custom_call.1} parent=0 // loop_header
    %s9 = sphi 0, %s13
    %p10 = scmp.ge.s32.totalorder %s9, 4
    %s16 = sphi 0, %s35
    %s17 = sphi 0, %s31
    %s18 = sphi 0, %s27
    %s19 = sphi 0, %s16
    %s20 = sphi 0, %s17
    %s21 = sphi 0, %s18
    %s22 = sphi 0, %s19
    %s23 = sphi 0, %s20
    %s24 = sphi 0, %s21
    %s46 = sphi 0, %s48
    %s49 = sphi 0, %s46
    %s50 = sphi 0, %s49
    %s66 = sphi 0, %s50
    %s80 = sphi 0, %s82
    %s83 = sphi 0, %s80
    %s84 = sphi 0, %s83
    %s100 = sphi 0, %s84
    %s114 = sphi 0, %s116
    %s117 = sphi 0, %s114
    %s118 = sphi 0, %s117
    %s134 = sphi 0, %s118
    %s142 = sphi 0, %s144
    %s145 = sphi 0, %s142
    %s146 = sphi 0, %s145
    %s162 = sphi 0, %s146
  $region4: #{tpu_custom_call.1} parent=0 // loop_header_branch
    %12 = sbr.rel (%p10) target = $region8
  $region5: #{tpu_custom_call.1} parent=0 // loop_body
    %s14 = ssub.s32 %s9, 1
    %s15 = ssub.s32 %s9, 2
    %s25 = sadd.s32 1, %s18
    %p26 = scmp.ge.s32.totalorder %s25, 1
    %s27 = scalar_select %p26, 0, %s25
    %s28 = sadd.s32 1, %s17
    %s29 = scalar_select %p26, %s28, %s17
    %p30 = scmp.ge.s32.totalorder %s29, 1
    %s31 = scalar_select %p30, 0, %s29
    %s32 = sadd.s32 1, %s16
    %s33 = scalar_select %p30, %s32, %s16
    %p34 = scmp.ge.s32.totalorder %s33, 2
    %s35 = scalar_select %p34, 0, %s33
    %s36 = sadd.s32 %s17, %s18
    %p37 = scmp.lt.s32.totalorder %s36, 0
    %s38 = scalar_select %p37, %s36, 0
    %s39 = sadd.s32 %s31, %s27
    %p40 = scmp.lt.s32.totalorder %s39, 0
    %s41 = scalar_select %p40, %s39, 0
    %s42 = ssub.s32 %s16, %s35
    %s43 = ssub.s32 %s38, %s41
    %s44 = sor.u32 %s42, %s43
    %p45 = scmp.eq.s32.totalorder %s44, 0
    %s47 = sadd.s32 %s46, 1
    %s48 = scalar_select %p45, %s46, %s47
    %p51 = pneg %p45
    %p52 = scmp.eq.s32.totalorder %s9, 1
    %p53 = por %p51, %p52
    %p54 = scmp.ne.s32.totalorder %s46, %s49
    %p55 = scmp.eq.s32.totalorder %s9, 0
    %p56 = por %p54, %p55
    %p57 = scmp.ne.s32.totalorder %s46, %s49
    %p58 = scmp.eq.s32.totalorder %s14, 1
    %p59 = por %p57, %p58
    %p60 = scmp.ne.s32.totalorder %s49, %s50
    %p61 = scmp.eq.s32.totalorder %s14, 0
    %p62 = por %p60, %p61
    %p63 = scmp.ne.s32.totalorder %s49, %s50
    %p64 = scmp.eq.s32.totalorder %s15, 1
    %p65 = por %p63, %p64
    %p67 = scmp.ne.s32.totalorder %s50, %s66
    %p68 = scmp.eq.s32.totalorder %s15, 0
    %p69 = por %p67, %p68
    %s70 = sadd.s32 %s17, %s18
    %p71 = scmp.lt.s32.totalorder %s70, 0
    %s72 = scalar_select %p71, %s70, 0
    %s73 = sadd.s32 %s31, %s27
    %p74 = scmp.lt.s32.totalorder %s73, 0
    %s75 = scalar_select %p74, %s73, 0
    %s76 = ssub.s32 %s16, %s35
    %s77 = ssub.s32 %s72, %s75
    %s78 = sor.u32 %s76, %s77
    %p79 = scmp.eq.s32.totalorder %s78, 0
    %s81 = sadd.s32 %s80, 1
    %s82 = scalar_select %p79, %s80, %s81
    %p85 = pneg %p79
    %p86 = scmp.eq.s32.totalorder %s9, 1
    %p87 = por %p85, %p86
    %p88 = scmp.ne.s32.totalorder %s80, %s83
    %p89 = scmp.eq.s32.totalorder %s9, 0
    %p90 = por %p88, %p89
    %p91 = scmp.ne.s32.totalorder %s80, %s83
    %p92 = scmp.eq.s32.totalorder %s14, 1
    %p93 = por %p91, %p92
    %p94 = scmp.ne.s32.totalorder %s83, %s84
    %p95 = scmp.eq.s32.totalorder %s14, 0
    %p96 = por %p94, %p95
    %p97 = scmp.ne.s32.totalorder %s83, %s84
    %p98 = scmp.eq.s32.totalorder %s15, 1
    %p99 = por %p97, %p98
    %p101 = scmp.ne.s32.totalorder %s84, %s100
    %p102 = scmp.eq.s32.totalorder %s15, 0
    %p103 = por %p101, %p102
    %s104 = sadd.s32 %s17, %s18
    %p105 = scmp.lt.s32.totalorder %s104, 0
    %s106 = scalar_select %p105, %s104, 0
    %s107 = sadd.s32 %s31, %s27
    %p108 = scmp.lt.s32.totalorder %s107, 0
    %s109 = scalar_select %p108, %s107, 0
    %s110 = ssub.s32 %s16, %s35
    %s111 = ssub.s32 %s106, %s109
    %s112 = sor.u32 %s110, %s111
    %p113 = scmp.eq.s32.totalorder %s112, 0
    %s115 = sadd.s32 %s114, 1
    %s116 = scalar_select %p113, %s114, %s115
    %p119 = pneg %p113
    %p120 = scmp.eq.s32.totalorder %s9, 1
    %p121 = por %p119, %p120
    %p122 = scmp.ne.s32.totalorder %s114, %s117
    %p123 = scmp.eq.s32.totalorder %s9, 0
    %p124 = por %p122, %p123
    %p125 = scmp.ne.s32.totalorder %s114, %s117
    %p126 = scmp.eq.s32.totalorder %s14, 1
    %p127 = por %p125, %p126
    %p128 = scmp.ne.s32.totalorder %s117, %s118
    %p129 = scmp.eq.s32.totalorder %s14, 0
    %p130 = por %p128, %p129
    %p131 = scmp.ne.s32.totalorder %s117, %s118
    %p132 = scmp.eq.s32.totalorder %s15, 1
    %p133 = por %p131, %p132
    %p135 = scmp.ne.s32.totalorder %s118, %s134
    %p136 = scmp.eq.s32.totalorder %s15, 0
    %p137 = por %p135, %p136
    %s138 = ssub.s32 %s16, %s35
    %s139 = ssub.s32 %s17, %s31
    %s140 = sor.u32 %s138, %s139
    %p141 = scmp.eq.s32.totalorder %s140, 0
    %s143 = sadd.s32 %s142, 1
    %s144 = scalar_select %p141, %s142, %s143
    %p147 = pneg %p141
    %p148 = scmp.eq.s32.totalorder %s9, 1
    %p149 = por %p147, %p148
    %p150 = scmp.ne.s32.totalorder %s142, %s145
    %p151 = scmp.eq.s32.totalorder %s9, 0
    %p152 = por %p150, %p151
    %p153 = scmp.ne.s32.totalorder %s142, %s145
    %p154 = scmp.eq.s32.totalorder %s14, 1
    %p155 = por %p153, %p154
    %p156 = scmp.ne.s32.totalorder %s145, %s146
    %p157 = scmp.eq.s32.totalorder %s14, 0
    %p158 = por %p156, %p157
    %p159 = scmp.ne.s32.totalorder %s145, %s146
    %p160 = scmp.eq.s32.totalorder %s15, 1
    %p161 = por %p159, %p160
    %p163 = scmp.ne.s32.totalorder %s146, %s162
    %p164 = scmp.eq.s32.totalorder %s15, 0
    %p165 = por %p163, %p164
    %p166 = scmp.le.s32.totalorder 1, %s9
    %p167 = scmp.lt.s32.totalorder %s9, 3
    %p168 = pnand %p166, %p167
    %p169 = pneg %p168
    // Predicated region
    $region9: #{tpu_custom_call.1} parent=5 // pred_check
      _
    $region10: #{tpu_custom_call.1} parent=5 // pred_check_branch
      %171 = sbr.rel (%p168) target = $region12
    $region11: #{tpu_custom_call.1} parent=5 // pred_region
      %s172 = ssub.s32 %s9, 1
    $region12: #{tpu_custom_call.1} parent=5 // pred_fallthru
      _
    %p173 = scmp.lt.s32.totalorder %s9, 2
    // Predicated region
    $region13: #{tpu_custom_call.1} parent=5 // pred_check
      %p174 = pneg %p173
    $region14: #{tpu_custom_call.1} parent=5 // pred_check_branch
      %176 = sbr.rel (%p174) target = $region16
    $region15: #{tpu_custom_call.1} parent=5 // pred_region
      // Predicated region
      $region17: #{tpu_custom_call.1} parent=15 // pred_check
        %p177 = pneg %p56
      $region18: #{tpu_custom_call.1} parent=15 // pred_check_branch
        %179 = sbr.rel (%p177) target = $region20
      $region19: #{tpu_custom_call.1} parent=15 // pred_region
        %s180 = sadd.s32 %s17, %s18
        %p181 = scmp.lt.s32.totalorder %s180, 0
        %s182 = scalar_select %p181, %s180, 0
        %s183 = smul.u32 2, %s182
        %p184 = scmp.lt.s32.totalorder %s16, 1
        %s185 = scalar_select %p184, %s16, 1
        %p186 = scmp.lt.s32.totalorder %s183, 1
        %s187 = scalar_select %p186, %s183, 1
        %s188 = smul.addr %s185, 2
        %s189 = sadd.s32 %s187, %s188
        %s190 = smul.addr %s189, 8
        %s191 = scalar_lea.vmem %s0, %s190
        %s192 = sadd.s32 %s17, %s18
        %p193 = scmp.lt.s32.totalorder %s192, 0
        %s194 = scalar_select %p193, %s192, 0
        %s195 = smul.u32 2, %s194
      $region20: #{tpu_custom_call.1} parent=15 // pred_fallthru
        _
      // Predicated region
      $region21: #{tpu_custom_call.1} parent=15 // pred_check
        %p196 = pneg %p90
      $region22: #{tpu_custom_call.1} parent=15 // pred_check_branch
        %198 = sbr.rel (%p196) target = $region24
      $region23: #{tpu_custom_call.1} parent=15 // pred_region
        %s199 = sadd.s32 %s17, %s18
        %p200 = scmp.lt.s32.totalorder %s199, 0
        %s201 = scalar_select %p200, %s199, 0
        %s202 = smul.u32 2, %s201
        %p203 = scmp.lt.s32.totalorder %s16, 1
        %s204 = scalar_select %p203, %s16, 1
        %p205 = scmp.lt.s32.totalorder %s202, 1
        %s206 = scalar_select %p205, %s202, 1
        %s207 = smul.addr %s204, 2
        %s208 = sadd.s32 %s206, %s207
        %s209 = smul.addr %s208, 4
        %s210 = scalar_lea.vmem %s1, %s209
        %s211 = sadd.s32 %s17, %s18
        %p212 = scmp.lt.s32.totalorder %s211, 0
        %s213 = scalar_select %p212, %s211, 0
        %s214 = smul.u32 2, %s213
      $region24: #{tpu_custom_call.1} parent=15 // pred_fallthru
        _
      // Predicated region
      $region25: #{tpu_custom_call.1} parent=15 // pred_check
        %p215 = pneg %p124
      $region26: #{tpu_custom_call.1} parent=15 // pred_check_branch
        %217 = sbr.rel (%p215) target = $region28
      $region27: #{tpu_custom_call.1} parent=15 // pred_region
        %s218 = sadd.s32 %s17, %s18
        %p219 = scmp.lt.s32.totalorder %s218, 0
        %s220 = scalar_select %p219, %s218, 0
        %s221 = smul.u32 2, %s220
        %p222 = scmp.lt.s32.totalorder %s16, 1
        %s223 = scalar_select %p222, %s16, 1
        %p224 = scmp.lt.s32.totalorder %s221, 1
        %s225 = scalar_select %p224, %s221, 1
        %s226 = smul.addr %s223, 2
        %s227 = sadd.s32 %s225, %s226
        %s228 = scalar_lea.vmem %s2, %s227
        %s229 = sadd.s32 %s17, %s18
        %p230 = scmp.lt.s32.totalorder %s229, 0
        %s231 = scalar_select %p230, %s229, 0
        %s232 = smul.u32 2, %s231
      $region28: #{tpu_custom_call.1} parent=15 // pred_fallthru
        _
    $region16: #{tpu_custom_call.1} parent=5 // pred_fallthru
      _
    %p233 = scmp.le.s32.totalorder 1, %s9
    %p234 = scmp.lt.s32.totalorder %s9, 3
    %p235 = pnand %p233, %p234
    %p236 = pneg %p235
    // Predicated region
    $region29: #{tpu_custom_call.1} parent=5 // pred_check
      _
    $region30: #{tpu_custom_call.1} parent=5 // pred_check_branch
      %238 = sbr.rel (%p235) target = $region32
    $region31: #{tpu_custom_call.1} parent=5 // pred_region
      %s239 = ssub.s32 %s9, 1
      %s240 = sadd.s32 %s20, %s21
      %p241 = scmp.lt.s32.totalorder %s240, 0
      %s242 = scalar_select %p241, %s240, 0
      %s243 = smul.u32 2, %s242
      %p244 = scmp.lt.s32.totalorder %s19, 1
      %s245 = scalar_select %p244, %s19, 1
      %p246 = scmp.lt.s32.totalorder %s243, 1
      %s247 = scalar_select %p246, %s243, 1
      %s248 = smul.addr %s245, 2
      %s249 = sadd.s32 %s247, %s248
      %s250 = smul.addr %s249, 8
      %s251 = scalar_lea.vmem %s0, %s250
      %p252 = pneg %p62
      %p253 = pneg %p59
      %s254 = sadd.s32 %s20, %s21
      %p255 = scmp.lt.s32.totalorder %s254, 0
      %s256 = scalar_select %p255, %s254, 0
      %s257 = smul.u32 2, %s256
      %p258 = scmp.lt.s32.totalorder %s19, 1
      %s259 = scalar_select %p258, %s19, 1
      %p260 = scmp.lt.s32.totalorder %s257, 1
      %s261 = scalar_select %p260, %s257, 1
      %s262 = smul.addr %s259, 2
      %s263 = sadd.s32 %s261, %s262
      %s264 = smul.addr %s263, 4
      %s265 = scalar_lea.vmem %s1, %s264
      %p266 = pneg %p96
      %p267 = pneg %p93
      %s268 = sadd.s32 %s20, %s21
      %p269 = scmp.lt.s32.totalorder %s268, 0
      %s270 = scalar_select %p269, %s268, 0
      %s271 = smul.u32 2, %s270
      %p272 = scmp.lt.s32.totalorder %s19, 1
      %s273 = scalar_select %p272, %s19, 1
      %p274 = scmp.lt.s32.totalorder %s271, 1
      %s275 = scalar_select %p274, %s271, 1
      %s276 = smul.addr %s273, 2
      %s277 = sadd.s32 %s275, %s276
      %s278 = scalar_lea.vmem %s2, %s277
      %p279 = pneg %p130
      %p280 = pneg %p127
      %p281 = pneg %p158
      %p282 = pneg %p155
      %p283 = scmp.lt.s32.totalorder %s19, 1
      %s284 = scalar_select %p283, %s19, 1
      %p285 = scmp.lt.s32.totalorder %s20, 0
      %s286 = scalar_select %p285, %s20, 0
      %s287 = sadd.s32 %s286, %s284
      %s288 = scalar_lea.vmem %s3, %s287
      %s289 = sadd.s32 %s20, %s21
      %p290 = scmp.lt.s32.totalorder %s289, 0
      %s291 = scalar_select %p290, %s289, 0
      %s292 = smul.u32 2, %s291
      %p293 = scmp.lt.s32.totalorder %s19, 1
      %s294 = scalar_select %p293, %s19, 1
      %p295 = scmp.lt.s32.totalorder %s292, 1
      %s296 = scalar_select %p295, %s292, 1
      %s297 = smul.addr %s294, 2
      %s298 = sadd.s32 %s296, %s297
      %s299 = smul.addr %s298, 8
      %s300 = scalar_lea.vmem %s0, %s299
      %s301 = sadd.s32 %s20, %s21
      %p302 = scmp.lt.s32.totalorder %s301, 0
      %s303 = scalar_select %p302, %s301, 0
      %s304 = smul.u32 2, %s303
      %s305 = sadd.s32 %s20, %s21
      %p306 = scmp.lt.s32.totalorder %s305, 0
      %s307 = scalar_select %p306, %s305, 0
      %s308 = smul.u32 2, %s307
      %p309 = scmp.lt.s32.totalorder %s19, 1
      %s310 = scalar_select %p309, %s19, 1
      %p311 = scmp.lt.s32.totalorder %s308, 1
      %s312 = scalar_select %p311, %s308, 1
      %s313 = smul.addr %s310, 2
      %s314 = sadd.s32 %s312, %s313
      %s315 = smul.addr %s314, 4
      %s316 = scalar_lea.vmem %s1, %s315
      %s317 = sadd.s32 %s20, %s21
      %p318 = scmp.lt.s32.totalorder %s317, 0
      %s319 = scalar_select %p318, %s317, 0
      %s320 = smul.u32 2, %s319
      %s321 = sadd.s32 %s20, %s21
      %p322 = scmp.lt.s32.totalorder %s321, 0
      %s323 = scalar_select %p322, %s321, 0
      %s324 = smul.u32 2, %s323
      %p325 = scmp.lt.s32.totalorder %s19, 1
      %s326 = scalar_select %p325, %s19, 1
      %p327 = scmp.lt.s32.totalorder %s324, 1
      %s328 = scalar_select %p327, %s324, 1
      %s329 = smul.addr %s326, 2
      %s330 = sadd.s32 %s328, %s329
      %s331 = scalar_lea.vmem %s2, %s330
      %s332 = sadd.s32 %s20, %s21
      %p333 = scmp.lt.s32.totalorder %s332, 0
      %s334 = scalar_select %p333, %s332, 0
      %s335 = smul.u32 2, %s334
      %p336 = scmp.lt.s32.totalorder %s19, 1
      %s337 = scalar_select %p336, %s19, 1
      %p338 = scmp.lt.s32.totalorder %s20, 0
      %s339 = scalar_select %p338, %s20, 0
      %s340 = sadd.s32 %s339, %s337
      %s341 = scalar_lea.vmem %s3, %s340
      %v342 = vld [vmem:[%s300] sm:$0x7f]
      %v343 = vld [vmem:[%s300 + $0x8] sm:$0x7f]
      %v344 = vld [vmem:[%s316] sm:$0xff]
      %vm345 = vcmask 1046528
      %v346 = vsel %vm345, %v342, -inf
      %v347 = vrot.slane %v346, 4
      %v348 = vmax.f32 %v346, %v347
      %v349 = vrot.slane %v348, 2
      %v350 = vmax.f32 %v348, %v349
      %v351 = vrot.slane %v350, 1
      %v352 = vmax.f32 %v350, %v351
      %v353 = vsel %vm345, %v343, -inf
      %v354 = vrot.slane %v353, 4
      %v355 = vmax.f32 %v353, %v354
      %v356 = vrot.slane %v355, 2
      %v357 = vmax.f32 %v355, %v356
      %v358 = vrot.slane %v357, 1
      %v359 = vmax.f32 %v357, %v358
      %v360 = vsub.f32 %v342, %v352
      %v361 = vsub.f32 %v343, %v359
      %v362 = vmul.f32 %v360, 1.442695
      %v363 = vpow.pop %v362
      %v364 = vmul.f32 %v361, 1.442695
      %v365 = vpow.pop %v364
      %v366 = vsel %vm345, %v363, 0.0
      %v367 = vrot.slane %v366, 4
      %v368 = vadd.f32 %v366, %v367
      %v369 = vrot.slane %v368, 2
      %v370 = vadd.f32 %v368, %v369
      %v371 = vrot.slane %v370, 1
      %v372 = vadd.f32 %v370, %v371
      %v373 = vsel %vm345, %v365, 0.0
      %v374 = vrot.slane %v373, 4
      %v375 = vadd.f32 %v373, %v374
      %v376 = vrot.slane %v375, 2
      %v377 = vadd.f32 %v375, %v376
      %v378 = vrot.slane %v377, 1
      %v379 = vadd.f32 %v377, %v378
      %v380 = vlog2.pop %v372
      %v381 = vmul.f32 %v380, 0.6931472
      %v382 = vlog2.pop %v379
      %v383 = vmul.f32 %v382, 0.6931472
      %v384 = vadd.f32 %v352, %v381
      %v385 = vadd.f32 %v359, %v383
      %vm386 = vcmask 1046532
      %v387 = vsel %vm386, %v342, -inf
      %v388 = vrot.slane %v387, 4
      %v389 = vmax.f32 %v387, %v388
      %v390 = vrot.slane %v389, 2
      %v391 = vmax.f32 %v389, %v390
      %v392 = vrot.slane %v391, 1
      %v393 = vmax.f32 %v391, %v392
      %v394 = vsel %vm386, %v343, -inf
      %v395 = vrot.slane %v394, 4
      %v396 = vmax.f32 %v394, %v395
      %v397 = vrot.slane %v396, 2
      %v398 = vmax.f32 %v396, %v397
      %v399 = vrot.slane %v398, 1
      %v400 = vmax.f32 %v398, %v399
      %v401 = vmax.f32 %v342, %v393
      %v402 = vmax.f32 %v343, %v400
      %v403 = vsub.f32 %v342, %v401
      %v404 = vsub.f32 %v343, %v402
      %v405 = vmul.f32 %v403, 1.442695
      %v406 = vpow.pop %v405
      %v407 = vmul.f32 %v404, 1.442695
      %v408 = vpow.pop %v407
      %v409 = vlaneseq
      %v410 = vshrl.u32 %v409, 7
      %v411 = vsub.s32 0, %v410
      %v412 = vrot.slane %v401, %v411
      %v413 = vlaneseq
      %v414 = vshrl.u32 %v413, 7
      %v415 = vsub.s32 0, %v414
      %v416 = vrot.slane %v402, %v415
      %v417 = vsub.f32 %v342, %v412
      %v418 = vsub.f32 %v343, %v416
      %v419 = vmul.f32 %v417, 1.442695
      %v420 = vpow.pop %v419
      %v421 = vmul.f32 %v418, 1.442695
      %v422 = vpow.pop %v421
      %v425 = vrot.slane %v420, 4
      %v426 = vrot.slane %v422, 4
      %vm429 = vcmask 1042432
      %v430 = vsel %vm429, %v425, 0.0
      %v431 = vrot.slane %v430, 4
      %v432 = vadd.f32 %v430, %v431
      %v433 = vrot.slane %v432, 2
      %v434 = vadd.f32 %v432, %v433
      %v435 = vrot.slane %v434, 1
      %v436 = vadd.f32 %v434, %v435
      %v437 = vsel %vm429, %v426, 0.0
      %v438 = vrot.slane %v437, 4
      %v439 = vadd.f32 %v437, %v438
      %v440 = vrot.slane %v439, 2
      %v441 = vadd.f32 %v439, %v440
      %v442 = vrot.slane %v441, 1
      %v443 = vadd.f32 %v441, %v442
      %v444 = vadd.f32 %v406, %v436
      %v445 = vadd.f32 %v408, %v443
      %v446 = vlog2.pop %v444
      %v447 = vmul.f32 %v446, 0.6931472
      %v448 = vlog2.pop %v445
      %v449 = vmul.f32 %v448, 0.6931472
      %v450 = vadd.f32 %v401, %v447
      %v451 = vadd.f32 %v402, %v449
      %v453 = vcombine.high %v344, %v344
      %vm455 = vcmask 1043456
      %v456 = vsel %vm455, %v344, -inf
      %v457 = vrot.slane %v456, 4
      %v458 = vmax.f32 %v456, %v457
      %v459 = vrot.slane %v458, 2
      %v460 = vmax.f32 %v458, %v459
      %v461 = vrot.slane %v460, 1
      %v462 = vmax.f32 %v460, %v461
      %v463 = vsel %vm455, %v453, -inf
      %v464 = vrot.slane %v463, 4
      %v465 = vmax.f32 %v463, %v464
      %v466 = vrot.slane %v465, 2
      %v467 = vmax.f32 %v465, %v466
      %v468 = vrot.slane %v467, 1
      %v469 = vmax.f32 %v467, %v468
      %v472 = vcombine.low %v462, %v469
      %v474 = vsub.f32 %v344, %v472
      %v475 = vmul.f32 %v474, 1.442695
      %v476 = vpow.pop %v475
      %v478 = vcombine.high %v476, %v476
      %v480 = vsel %vm455, %v476, 0.0
      %v481 = vrot.slane %v480, 4
      %v482 = vadd.f32 %v480, %v481
      %v483 = vrot.slane %v482, 2
      %v484 = vadd.f32 %v482, %v483
      %v485 = vrot.slane %v484, 1
      %v486 = vadd.f32 %v484, %v485
      %v487 = vsel %vm455, %v478, 0.0
      %v488 = vrot.slane %v487, 4
      %v489 = vadd.f32 %v487, %v488
      %v490 = vrot.slane %v489, 2
      %v491 = vadd.f32 %v489, %v490
      %v492 = vrot.slane %v491, 1
      %v493 = vadd.f32 %v491, %v492
      %v496 = vcombine.low %v342, %v343
      %v498 = vmul.f32 %v476, %v496
      %v500 = vcombine.high %v498, %v498
      %v502 = vsel %vm455, %v498, 0.0
      %v503 = vrot.slane %v502, 4
      %v504 = vadd.f32 %v502, %v503
      %v505 = vrot.slane %v504, 2
      %v506 = vadd.f32 %v504, %v505
      %v507 = vrot.slane %v506, 1
      %v508 = vadd.f32 %v506, %v507
      %v509 = vsel %vm455, %v500, 0.0
      %v510 = vrot.slane %v509, 4
      %v511 = vadd.f32 %v509, %v510
      %v512 = vrot.slane %v511, 2
      %v513 = vadd.f32 %v511, %v512
      %v514 = vrot.slane %v513, 1
      %v515 = vadd.f32 %v513, %v514
      %v516 = vsub.f32 %v450, %v342
      %v517 = vsub.f32 %v451, %v343
      %v520 = vcombine.low %v516, %v517
      %v522 = vmul.f32 %v476, %v520
      %v525 = vcombine.low %v508, %v515
      %v527 = vadd.f32 %v522, %v525
      %v530 = vcombine.low %v486, %v493
      %v532 = vrcp.pop %v530
      %v533 = vmul.f32 %v527, %v532
      %v536 = vcombine.low %v384, %v385
      %v538 = vsub.f32 %v533, %v536
      %v539 = vmul.f32 %v538, 0.25
      %v540 = vld [vmem:[%s331] sm:$0x3]
      %vm541 = vcmp.eq.s32.totalorder %v540, 0
      %v544 = vunpack.c.l.s4 1966171168
      %v545 = vunpack.c.0.s8 %v544
      %v546 = vlaneseq
      %v547 = vshrl.u32 %v546, 7
      %v548 = vsub.s32 %v545, %v547
      %v549 = vrot.slane %v539, %v548
      %v551 = vunpack.c.l.s4 1966171168
      %v552 = vunpack.c.0.s8 %v551
      %v553 = vlaneseq
      %v554 = vshrl.u32 %v553, 7
      %v555 = vsub.s32 %v552, %v554
      %v556 = vrot.slane %v549, %v555
      %v558 = vsel %vm541, %v556, 0.0
      %p559 = scmp.eq.s32.totalorder %s21, 0
      // Predicated region
      $region33: #{tpu_custom_call.1} parent=31 // pred_check
        %p560 = pneg %p559
      $region34: #{tpu_custom_call.1} parent=31 // pred_check_branch
        %562 = sbr.rel (%p560) target = $region36
      $region35: #{tpu_custom_call.1} parent=31 // pred_region
        %v563 = vlaneseq
        %vm564 = vcmp.ge.s32.totalorder %v563, 0
        %vm565 = vcmp.lt.s32.totalorder %v563, 256
        %vm566 = vmand %vm564, %vm565
        %567 = vst.msk [vmem:[#allocation2] sm:$0x3] %vm566, 0.0
      $region36: #{tpu_custom_call.1} parent=31 // pred_fallthru
        _
      %v568 = vld [vmem:[#allocation2] sm:$0x3]
      %v569 = vadd.f32 %v568, %v558
      %v570 = vlaneseq
      %vm571 = vcmp.ge.s32.totalorder %v570, 0
      %vm572 = vcmp.lt.s32.totalorder %v570, 256
      %vm573 = vmand %vm571, %vm572
      %574 = vst.msk [vmem:[#allocation2] sm:$0x3] %vm573, %v569
      // Predicated region
      $region37: #{tpu_custom_call.1} parent=31 // pred_check
        %p575 = pneg %p559
      $region38: #{tpu_custom_call.1} parent=31 // pred_check_branch
        %577 = sbr.rel (%p575) target = $region40
      $region39: #{tpu_custom_call.1} parent=31 // pred_region
        %v578 = vld [vmem:[#allocation2] sm:$0x3]
        %v580 = vlaneseq
        %v581 = vshrl.u32 %v580, 7
        %v582 = vsub.s32 0, %v581
        %v583 = vrot.slane %v578, %v582
        %v584 = vlaneseq
        %v585 = vshrl.u32 %v584, 7
        %v586 = vsub.s32 1, %v585
        %v587 = vrot.slane %v578, %v586
        %vm590 = vcmask 1040384
        %v591 = vsel %vm590, %v583, 0.0
        %v592 = vsel %vm590, %v587, 0.0
        %v593 = vadd.f32 %v591, %v592
        %594 = vadd.xlane.f32.xlu0 %v593
        %v595 = vpop.xlane.xlu0 %594
        %vm596 = vcmask 0
        %597 = vst.msk [vmem:[%s341] sm:$0x1] %vm596, %v595
      $region40: #{tpu_custom_call.1} parent=31 // pred_fallthru
        _
      %p598 = scmp.lt.s32.totalorder %s19, 1
      %s599 = scalar_select %p598, %s19, 1
      %p600 = scmp.lt.s32.totalorder %s20, 0
      %s601 = scalar_select %p600, %s20, 0
      %s602 = sadd.s32 %s601, %s599
      %s603 = scalar_lea.vmem %s3, %s602
      // Predicated region
      $region41: #{tpu_custom_call.1} parent=31 // pred_check
        %p604 = pneg %p155
      $region42: #{tpu_custom_call.1} parent=31 // pred_check_branch
        %606 = sbr.rel (%p604) target = $region44
      $region43: #{tpu_custom_call.1} parent=31 // pred_region
        _
      $region44: #{tpu_custom_call.1} parent=31 // pred_fallthru
        _
    $region32: #{tpu_custom_call.1} parent=5 // pred_fallthru
      _
    %p607 = scmp.le.s32.totalorder 2, %s9
    // Predicated region
    $region45: #{tpu_custom_call.1} parent=5 // pred_check
      %p608 = pneg %p607
    $region46: #{tpu_custom_call.1} parent=5 // pred_check_branch
      %610 = sbr.rel (%p608) target = $region48
    $region47: #{tpu_custom_call.1} parent=5 // pred_region
      %s611 = ssub.s32 %s9, 2
      // Predicated region
      $region49: #{tpu_custom_call.1} parent=47 // pred_check
        %p612 = pneg %p161
      $region50: #{tpu_custom_call.1} parent=47 // pred_check_branch
        %614 = sbr.rel (%p612) target = $region52
      $region51: #{tpu_custom_call.1} parent=47 // pred_region
        %p615 = scmp.lt.s32.totalorder %s22, 1
        %s616 = scalar_select %p615, %s22, 1
        %p617 = scmp.lt.s32.totalorder %s23, 0
        %s618 = scalar_select %p617, %s23, 0
        %s619 = sadd.s32 %s618, %s616
        %s620 = scalar_lea.vmem %s3, %s619
      $region52: #{tpu_custom_call.1} parent=47 // pred_fallthru
        _
    $region48: #{tpu_custom_call.1} parent=5 // pred_fallthru
      _
  $region6: #{tpu_custom_call.1} parent=0 // loop_footer
    %s13 = sadd.s32 1, %s9
  $region7: #{tpu_custom_call.1} parent=0 // loop_footer_branch
    %8 = sbr.rel target = $region3
  $region8: #{tpu_custom_call.1} parent=0 // loop_exit
    _

</llo_original>
